<compile_context>
chip_gen: v5e
topology: v5e:2x2
jax: 0.10.0
libtpu: 0.0.40
codegen_flags: <defaults>
</compile_context>

<pallas_src>
import jax
import jax.numpy as jnp
from jax import lax
from jax.experimental import pallas as pl
from jax.experimental.pallas import tpu as pltpu

# ---- small, self-consistent shapes (reference defaults are 768 / 256) ----
HIDDEN_DIM = 32
SHARED_DIM = 32
EDGE_HID = 128
BATCH = 8
ALIGN_TEMP = 0.07

# packed small-param row layout: every segment starts on a 128-lane boundary
# so in-kernel slices are aligned views (no lane shuffles).
_OFF_BENC = 0                       # (1, 2*SHARED_DIM)  encoder bias [img|txt]
_OFF_B1 = 128                       # (1, EDGE_HID)      edge-MLP bias 1
_OFF_W2 = _OFF_B1 + EDGE_HID        # (1, EDGE_HID)      edge-MLP Linear(128,1) as a row
_OFF_B2 = _OFF_W2 + EDGE_HID        # (1, 1)             edge-MLP bias 2
_SMALL_W = ((_OFF_B2 + 1 + 127) // 128) * 128            # = 512

_VMEM = pl.BlockSpec(memory_space=pltpu.MemorySpace.VMEM)
_SMEM = pl.BlockSpec(memory_space=pltpu.MemorySpace.SMEM)

# Fixed causal graph over modality nodes: image -> shared -> text, image -> text.
_GRAPH_EDGES = [("image", "shared"), ("shared", "text"), ("image", "text")]


# --------------------------------------------------------------------------
# Fused kernel: encoder + CMSCM structural equations + edge MLP + align loss
# --------------------------------------------------------------------------
def _fused_discovery_kernel(xy_ref, w_enc_ref, w_szz_ref, w_rec_ref, w1_ref,
                            small_ref, feat_ref, scal_ref):
    S = SHARED_DIM
    B = xy_ref.shape[0]

    # ---- Definition encoder: one block-diagonal matmul -------------------
    # TODO(synk): the Definition encoder is assumed to be Linear + bias per
    # modality; if the reference adds an activation / LayerNorm it is missing.
    b_enc = small_ref[:, _OFF_BENC:_OFF_BENC + 2 * S]                    # (1, 2S)
    feats = (jnp.dot(xy_ref[...], w_enc_ref[...],
                     preferred_element_type=jnp.float32)
             + b_enc)                                                    # (B, 2S) = [img_f | txt_f]

    # ---- CMSCM structural equations: two merged matmuls ------------------
    szz_pre = jnp.dot(feats, w_szz_ref[...],
                      preferred_element_type=jnp.float32)                # (B, 3S)
    # tanh on the S block, ReLU on the Zx|Zy blocks (where-trick kept at
    # S=32 where per-block slices would be lane-misaligned).
    col = lax.broadcasted_iota(jnp.int32, szz_pre.shape, 1)
    szz = jnp.where(col < S, jnp.tanh(szz_pre), jnp.maximum(szz_pre, 0.0))
    recon = jnp.dot(szz, w_rec_ref[...],
                    preferred_element_type=jnp.float32)                  # (B, 2S) = [Xh | Yh]

    # lane-dense (B, 8S=256) output slab: [img|txt|S|Zx|Zy|Xh|Yh|pad]
    feat_ref[...] = jnp.concatenate(
        [feats, szz, recon, jnp.zeros((B, S), jnp.float32)], axis=-1)

    # ---- edge_weight_net on batch-pooled node features -------------------
    mean_ft = jnp.mean(feats, axis=0, keepdims=True)                     # (1, 2S)
    n_img = mean_ft[:, :S]
    n_txt = mean_ft[:, S:]
    n_shr = jnp.mean(szz[:, :S], axis=0, keepdims=True)                  # (1, S)
    combined = jnp.concatenate(                                          # (3, 2S) sublane concat
        [jnp.concatenate([n_img, n_shr], axis=-1),                       # image  -> shared
         jnp.concatenate([n_shr, n_txt], axis=-1),                       # shared -> text
         jnp.concatenate([n_img, n_txt], axis=-1)], axis=0)              # image  -> text
    b1 = small_ref[:, _OFF_B1:_OFF_B1 + EDGE_HID]                        # (1, 128)
    w2_row = small_ref[:, _OFF_W2:_OFF_W2 + EDGE_HID]                    # (1, 128)
    b2 = small_ref[:, _OFF_B2:_OFF_B2 + 1]                               # (1, 1)
    h = jnp.maximum(
        jnp.dot(combined, w1_ref[...], preferred_element_type=jnp.float32)
        + b1, 0.0)                                                       # (3, 128)
    # second Linear(128,1) as a lane reduction -> no (N,1) matmul / store
    logits = jnp.sum(h * w2_row, axis=-1, keepdims=True) + b2            # (3, 1)
    ew = jax.nn.sigmoid(logits)
    # direct element extraction (no masked cross-lane reduces)
    scal_ref[0] = ew[0, 0]
    scal_ref[1] = ew[1, 0]
    scal_ref[2] = ew[2, 0]

    # ---- alignment loss (CE over img @ txt.T / temp, diagonal labels) ----
    img_f = feats[:, :S]
    txt_f = feats[:, S:]
    sim = lax.dot_general(img_f, txt_f, (((1,), (1,)), ((), ())),
                          preferred_element_type=jnp.float32) / ALIGN_TEMP  # (B, B)
    m = jnp.max(sim, axis=-1, keepdims=True)
    lse = m + jnp.log(jnp.sum(jnp.exp(sim - m), axis=-1, keepdims=True))
    diag = jnp.sum(img_f * txt_f, axis=-1, keepdims=True) / ALIGN_TEMP      # O(B*D) diagonal
    scal_ref[3] = jnp.mean(lse - diag)


# --------------------------------------------------------------------------
# Parameters (deterministic synthetic init) with host-side weight packing
# --------------------------------------------------------------------------
def init_params(key):
    ks = jax.random.split(key, 16)
    H, S = HIDDEN_DIM, SHARED_DIM

    def w(k, i, o, scale=0.1):
        return scale * jax.random.normal(k, (i, o), jnp.float32)

    # raw per-module weights (same structure as the PyTorch reference)
    w_img, w_txt = w(ks[0], H, S), w(ks[1], H, S)
    b_img = 0.01 * jax.random.normal(ks[12], (1, S), jnp.float32)
    b_txt = 0.01 * jax.random.normal(ks[13], (1, S), jnp.float32)
    w_sx, w_sy = w(ks[2], S, S), w(ks[3], S, S)
    w_zx, w_zy = w(ks[4], S, S), w(ks[5], S, S)
    w_xs, w_xz = w(ks[6], S, S), w(ks[7], S, S)
    w_ys, w_yz = w(ks[8], S, S), w(ks[9], S, S)
    w1 = w(ks[10], 2 * S, EDGE_HID)
    b1 = 0.01 * jax.random.normal(ks[14], (1, EDGE_HID), jnp.float32)
    w2 = w(ks[11], EDGE_HID, 1)
    b2 = 0.01 * jax.random.normal(ks[15], (1, 1), jnp.float32)

    # ---- pre-pack merged-matmul weights (done once, on host) ----
    zHS = jnp.zeros((H, S), jnp.float32)
    zSS = jnp.zeros((S, S), jnp.float32)
    w_enc = jnp.concatenate(                                  # blockdiag(W_img, W_txt)
        [jnp.concatenate([w_img, zHS], 1),
         jnp.concatenate([zHS, w_txt], 1)], 0)                # (2H, 2S)
    w_szz = jnp.concatenate(                                  # [[Wsx,Wzx,0],[Wsy,0,Wzy]]
        [jnp.concatenate([w_sx, w_zx, zSS], 1),
         jnp.concatenate([w_sy, zSS, w_zy], 1)], 0)           # (2S, 3S)
    w_rec = jnp.concatenate(                                  # [[Wxs,Wys],[Wxz,0],[0,Wyz]]
        [jnp.concatenate([w_xs, w_ys], 1),
         jnp.concatenate([w_xz, zSS], 1),
         jnp.concatenate([zSS, w_yz], 1)], 0)                 # (3S, 2S)

    # ---- pack all small params into one lane-dense (1, 512) row ----
    small = jnp.zeros((1, _SMALL_W), jnp.float32)
    small = small.at[:, _OFF_BENC:_OFF_BENC + 2 * S].set(
        jnp.concatenate([b_img, b_txt], axis=-1))
    small = small.at[:, _OFF_B1:_OFF_B1 + EDGE_HID].set(b1)
    small = small.at[:, _OFF_W2:_OFF_W2 + EDGE_HID].set(w2.T)
    small = small.at[:, _OFF_B2:_OFF_B2 + 1].set(b2)

    return {"w_enc": w_enc, "w_szz": w_szz, "w_rec": w_rec, "w1": w1,
            "small": small}


# --------------------------------------------------------------------------
# Discovery.forward
# --------------------------------------------------------------------------
def discovery_forward(images, texts, params):
    B = images.shape[0]
    H, S = HIDDEN_DIM, SHARED_DIM

    # host-side packing of the two modality inputs -> single (B, 2H) DMA
    xy = jnp.concatenate([images, texts], axis=-1)

    flops = (2 * B * (2 * H) * (2 * S)            # encoder
             + 2 * B * (2 * S) * (3 * S)          # S|Zx|Zy
             + 2 * B * (3 * S) * (2 * S)          # X_hat|Y_hat
             + 2 * 3 * (2 * S) * EDGE_HID         # edge MLP layer 1
             + 2 * 3 * EDGE_HID                   # edge MLP layer 2 (reduce)
             + 2 * B * B * S)                     # alignment sim
    transcendentals = B * 3 * S + B * B + B * S + 3
    bytes_accessed = 4 * (xy.size + params["w_enc"].size + params["w_szz"].size
                          + params["w_rec"].size + params["w1"].size
                          + params["small"].size + B * 8 * S + 4)

    feat_slab, scal = pl.pallas_call(
        _fused_discovery_kernel,
        out_shape=(jax.ShapeDtypeStruct((B, 8 * S), jnp.float32),   # lane-dense slab
                   jax.ShapeDtypeStruct((4,), jnp.float32)),        # 3 edge weights + loss
        in_specs=[_VMEM] * 6,
        out_specs=(_VMEM, _SMEM),
        cost_estimate=pl.CostEstimate(flops=flops,
                                      transcendentals=transcendentals,
                                      bytes_accessed=bytes_accessed),
    )(xy, params["w_enc"], params["w_szz"], params["w_rec"], params["w1"],
      params["small"])

    # split the lane-dense slab (wrapper-side layout plumbing)
    img_feat = feat_slab[:, 0 * S:1 * S]
    txt_feat = feat_slab[:, 1 * S:2 * S]
    cmscm_out = {
        "S":     feat_slab[:, 2 * S:3 * S],
        "Zx":    feat_slab[:, 3 * S:4 * S],
        "Zy":    feat_slab[:, 4 * S:5 * S],
        "X_hat": feat_slab[:, 5 * S:6 * S],
        "Y_hat": feat_slab[:, 6 * S:7 * S],
    }
    edge_w = scal[:3]
    align_loss = scal[3]

    # mediation effects from the weighted graph (scalar glue)
    w_is, w_st, w_it = edge_w[0], edge_w[1], edge_w[2]
    direct = w_it
    indirect = w_is * w_st
    total = direct + indirect
    mediation = {
        "direct": direct,
        "indirect": indirect,
        "total": total,
        "effect_ratio": indirect / (total + 1e-8),
    }
    # TODO(synk): networkx graph-object mutation (update_edge_weights /
    # update_causal_relationships dict writes) has no Pallas equivalent;
    # the computed edge weights are returned directly instead.

    return {
        "image": img_feat,
        "text": txt_feat,
        "graph_edges": _GRAPH_EDGES,
        "cmscm_outputs": cmscm_out,
        "mediation_effects": mediation,
        "edge_weights": edge_w,
        "direct_effects": mediation["direct"],
        "indirect_effects": mediation["indirect"],
        "total_effects": mediation["total"],
        "alignment_loss": align_loss,   # fused into the same kernel
    }


if __name__ == "__main__":
    key = jax.random.PRNGKey(0)
    k_img, k_txt, k_par = jax.random.split(key, 3)
    images = jax.random.normal(k_img, (BATCH, HIDDEN_DIM), jnp.float32)
    texts = jax.random.normal(k_txt, (BATCH, HIDDEN_DIM), jnp.float32)
    params = init_params(k_par)

    out = discovery_forward(images, texts, params)

    jax.block_until_ready(out["cmscm_outputs"]["X_hat"])
    jax.block_until_ready(out["edge_weights"])
    jax.block_until_ready(out["alignment_loss"])

    assert out["image"].shape == (BATCH, SHARED_DIM)
    assert out["cmscm_outputs"]["S"].shape == (BATCH, SHARED_DIM)
    assert out["edge_weights"].shape == (len(_GRAPH_EDGES),)
    print("KERNEL_OK")
</pallas_src>

<mosaic_0001>
module attributes {stable_mosaic.version = 11 : i64} {
  func.func @_fused_discovery_kernel(%arg0: memref<8x64xf32, #tpu.memory_space<vmem>>, %arg1: memref<64x64xf32, #tpu.memory_space<vmem>>, %arg2: memref<64x96xf32, #tpu.memory_space<vmem>>, %arg3: memref<96x64xf32, #tpu.memory_space<vmem>>, %arg4: memref<64x128xf32, #tpu.memory_space<vmem>>, %arg5: memref<1x512xf32, #tpu.memory_space<vmem>>, %arg6: memref<8x256xf32, #tpu.memory_space<vmem>>, %arg7: memref<4xf32, #tpu.memory_space<smem>>) attributes {dimension_semantics = [], scalar_prefetch = 0 : i64, scratch_operands = 0 : i64, tpu.core_type = #tpu.core_type<tc>} {
    %c0 = arith.constant 0 : index
    %c0_0 = arith.constant 0 : index
    %0 = vector.load %arg5[%c0, %c0_0] : memref<1x512xf32, #tpu.memory_space<vmem>>, vector<1x64xf32>
    %c0_1 = arith.constant 0 : index
    %c0_2 = arith.constant 0 : index
    %1 = vector.load %arg0[%c0_1, %c0_2] : memref<8x64xf32, #tpu.memory_space<vmem>>, vector<8x64xf32>
    %c0_3 = arith.constant 0 : index
    %c0_4 = arith.constant 0 : index
    %2 = vector.load %arg1[%c0_3, %c0_4] : memref<64x64xf32, #tpu.memory_space<vmem>>, vector<64x64xf32>
    %cst = arith.constant dense<0.000000e+00> : vector<8x64xf32>
    %3 = tpu.matmul %1, %2, %cst {dimension_numbers = #tpu.dot_dimension_numbers<[1], [0], [0], [1], [0, 0, 1, 1], [], []>} : vector<8x64xf32>, vector<64x64xf32>, vector<8x64xf32> -> vector<8x64xf32>
    %4 = vector.broadcast %0 : vector<1x64xf32> to vector<8x64xf32>
    %5 = arith.addf %3, %4 : vector<8x64xf32>
    %c0_5 = arith.constant 0 : index
    %c0_6 = arith.constant 0 : index
    %6 = vector.load %arg2[%c0_5, %c0_6] : memref<64x96xf32, #tpu.memory_space<vmem>>, vector<64x96xf32>
    %cst_7 = arith.constant dense<0.000000e+00> : vector<8x96xf32>
    %7 = tpu.matmul %5, %6, %cst_7 {dimension_numbers = #tpu.dot_dimension_numbers<[1], [0], [0], [1], [0, 0, 1, 1], [], []>} : vector<8x64xf32>, vector<64x96xf32>, vector<8x96xf32> -> vector<8x96xf32>
    %8 = tpu.iota {dimensions = array<i32: 1>} : vector<8x96xi32>
    %c32_i32 = arith.constant 32 : i32
    %9 = vector.broadcast %c32_i32 : i32 to vector<8x96xi32>
    %10 = arith.cmpi slt, %8, %9 : vector<8x96xi32>
    %11 = math.tanh %7 : vector<8x96xf32>
    %cst_8 = arith.constant 0.000000e+00 : f32
    %12 = vector.broadcast %cst_8 : f32 to vector<8x96xf32>
    %13 = arith.maximumf %7, %12 : vector<8x96xf32>
    %14 = arith.select %10, %11, %13 : vector<8x96xi1>, vector<8x96xf32>
    %c0_9 = arith.constant 0 : index
    %c0_10 = arith.constant 0 : index
    %15 = vector.load %arg3[%c0_9, %c0_10] : memref<96x64xf32, #tpu.memory_space<vmem>>, vector<96x64xf32>
    %cst_11 = arith.constant dense<0.000000e+00> : vector<8x64xf32>
    %16 = tpu.matmul %14, %15, %cst_11 {dimension_numbers = #tpu.dot_dimension_numbers<[1], [0], [0], [1], [0, 0, 1, 1], [], []>} : vector<8x96xf32>, vector<96x64xf32>, vector<8x64xf32> -> vector<8x64xf32>
    %cst_12 = arith.constant 0.000000e+00 : f32
    %17 = vector.broadcast %cst_12 : f32 to vector<8x32xf32>
    %18 = tpu.concatenate %5, %14, %16, %17 in 1 : vector<8x64xf32>, vector<8x96xf32>, vector<8x64xf32>, vector<8x32xf32> -> vector<8x256xf32>
    %c0_13 = arith.constant 0 : index
    %c0_14 = arith.constant 0 : index
    %19 = vector.load %arg6[%c0_13, %c0_14] : memref<8x256xf32, #tpu.memory_space<vmem>>, vector<8x256xf32>
    tpu.vector_store %arg6[%c0_13, %c0_14], %18 {strides = array<i32>} : memref<8x256xf32, #tpu.memory_space<vmem>>, vector<8x256xf32>,
    %cst_15 = arith.constant dense<0.000000e+00> : vector<64xf32>
    %20 = vector.multi_reduction <add>, %5, %cst_15 [0] : vector<8x64xf32> to vector<64xf32>
    %21 = vector.shape_cast %20 : vector<64xf32> to vector<1x64xf32>
    %cst_16 = arith.constant 8.000000e+00 : f32
    %22 = vector.broadcast %cst_16 : f32 to vector<1x64xf32>
    %23 = arith.divf %21, %22 : vector<1x64xf32>
    %24 = vector.extract_strided_slice %23 {offsets = [0, 0], sizes = [1, 32], strides = [1, 1]} : vector<1x64xf32> to vector<1x32xf32>
    %25 = vector.extract_strided_slice %23 {offsets = [0, 32], sizes = [1, 32], strides = [1, 1]} : vector<1x64xf32> to vector<1x32xf32>
    %26 = vector.extract_strided_slice %14 {offsets = [0, 0], sizes = [8, 32], strides = [1, 1]} : vector<8x96xf32> to vector<8x32xf32>
    %cst_17 = arith.constant dense<0.000000e+00> : vector<32xf32>
    %27 = vector.multi_reduction <add>, %26, %cst_17 [0] : vector<8x32xf32> to vector<32xf32>
    %28 = vector.shape_cast %27 : vector<32xf32> to vector<1x32xf32>
    %cst_18 = arith.constant 8.000000e+00 : f32
    %29 = vector.broadcast %cst_18 : f32 to vector<1x32xf32>
    %30 = arith.divf %28, %29 : vector<1x32xf32>
    %31 = tpu.concatenate %24, %30 in 1 : vector<1x32xf32>, vector<1x32xf32> -> vector<1x64xf32>
    %32 = tpu.concatenate %30, %25 in 1 : vector<1x32xf32>, vector<1x32xf32> -> vector<1x64xf32>
    %33 = tpu.concatenate %24, %25 in 1 : vector<1x32xf32>, vector<1x32xf32> -> vector<1x64xf32>
    %34 = tpu.concatenate %31, %32, %33 in 0 : vector<1x64xf32>, vector<1x64xf32>, vector<1x64xf32> -> vector<3x64xf32>
    %c0_19 = arith.constant 0 : index
    %c128 = arith.constant 128 : index
    %35 = vector.load %arg5[%c0_19, %c128] : memref<1x512xf32, #tpu.memory_space<vmem>>, vector<1x128xf32>
    %c0_20 = arith.constant 0 : index
    %c256 = arith.constant 256 : index
    %36 = vector.load %arg5[%c0_20, %c256] : memref<1x512xf32, #tpu.memory_space<vmem>>, vector<1x128xf32>
    %c0_21 = arith.constant 0 : index
    %c384 = arith.constant 384 : index
    %37 = vector.load %arg5[%c0_21, %c384] : memref<1x512xf32, #tpu.memory_space<vmem>>, vector<1x1xf32>
    %c0_22 = arith.constant 0 : index
    %c0_23 = arith.constant 0 : index
    %38 = vector.load %arg4[%c0_22, %c0_23] : memref<64x128xf32, #tpu.memory_space<vmem>>, vector<64x128xf32>
    %cst_24 = arith.constant dense<0.000000e+00> : vector<3x128xf32>
    %39 = tpu.matmul %34, %38, %cst_24 {dimension_numbers = #tpu.dot_dimension_numbers<[1], [0], [0], [1], [0, 0, 1, 1], [], []>} : vector<3x64xf32>, vector<64x128xf32>, vector<3x128xf32> -> vector<3x128xf32>
    %40 = vector.broadcast %35 : vector<1x128xf32> to vector<3x128xf32>
    %41 = arith.addf %39, %40 : vector<3x128xf32>
    %cst_25 = arith.constant 0.000000e+00 : f32
    %42 = vector.broadcast %cst_25 : f32 to vector<3x128xf32>
    %43 = arith.maximumf %41, %42 : vector<3x128xf32>
    %44 = vector.broadcast %36 : vector<1x128xf32> to vector<3x128xf32>
    %45 = arith.mulf %43, %44 : vector<3x128xf32>
    %cst_26 = arith.constant dense<0.000000e+00> : vector<3xf32>
    %46 = vector.multi_reduction <add>, %45, %cst_26 [1] : vector<3x128xf32> to vector<3xf32>
    %47 = vector.shape_cast %46 : vector<3xf32> to vector<3x1xf32>
    %48 = vector.broadcast %37 : vector<1x1xf32> to vector<3x1xf32>
    %49 = arith.addf %47, %48 : vector<3x1xf32>
    %50 = arith.negf %49 : vector<3x1xf32>
    %51 = math.exp %50 : vector<3x1xf32>
    %cst_27 = arith.constant 1.000000e+00 : f32
    %52 = vector.broadcast %cst_27 : f32 to vector<3x1xf32>
    %53 = arith.addf %52, %51 : vector<3x1xf32>
    %54 = arith.divf %52, %53 : vector<3x1xf32>
    %55 = vector.extract_strided_slice %54 {offsets = [0, 0], sizes = [1, 1], strides = [1, 1]} : vector<3x1xf32> to vector<1x1xf32>
    %56 = vector.extract %55[0, 0] : f32 from vector<1x1xf32>
    %c0_28 = arith.constant 0 : index
    %57 = memref.load %arg7[%c0_28] : memref<4xf32, #tpu.memory_space<smem>>
    memref.store %56, %arg7[%c0_28] : memref<4xf32, #tpu.memory_space<smem>>
    %58 = vector.extract_strided_slice %54 {offsets = [1, 0], sizes = [1, 1], strides = [1, 1]} : vector<3x1xf32> to vector<1x1xf32>
    %59 = vector.extract %58[0, 0] : f32 from vector<1x1xf32>
    %c1 = arith.constant 1 : index
    %60 = memref.load %arg7[%c1] : memref<4xf32, #tpu.memory_space<smem>>
    memref.store %59, %arg7[%c1] : memref<4xf32, #tpu.memory_space<smem>>
    %61 = vector.extract_strided_slice %54 {offsets = [2, 0], sizes = [1, 1], strides = [1, 1]} : vector<3x1xf32> to vector<1x1xf32>
    %62 = vector.extract %61[0, 0] : f32 from vector<1x1xf32>
    %c2 = arith.constant 2 : index
    %63 = memref.load %arg7[%c2] : memref<4xf32, #tpu.memory_space<smem>>
    memref.store %62, %arg7[%c2] : memref<4xf32, #tpu.memory_space<smem>>
    %64 = vector.extract_strided_slice %5 {offsets = [0, 0], sizes = [8, 32], strides = [1, 1]} : vector<8x64xf32> to vector<8x32xf32>
    %65 = vector.extract_strided_slice %5 {offsets = [0, 32], sizes = [8, 32], strides = [1, 1]} : vector<8x64xf32> to vector<8x32xf32>
    %cst_29 = arith.constant dense<0.000000e+00> : vector<8x8xf32>
    %66 = tpu.matmul %64, %65, %cst_29 {dimension_numbers = #tpu.dot_dimension_numbers<[1], [1], [0], [0], [0, 0, 1, 0], [], []>} : vector<8x32xf32>, vector<8x32xf32>, vector<8x8xf32> -> vector<8x8xf32>
    %cst_30 = arith.constant 7.000000e-02 : f32
    %67 = vector.broadcast %cst_30 : f32 to vector<8x8xf32>
    %68 = arith.divf %66, %67 : vector<8x8xf32>
    %cst_31 = arith.constant dense<0xFF800000> : vector<8xf32>
    %69 = vector.multi_reduction <maximumf>, %68, %cst_31 [1] : vector<8x8xf32> to vector<8xf32>
    %70 = vector.shape_cast %69 : vector<8xf32> to vector<8x1xf32>
    %71 = vector.broadcast %70 : vector<8x1xf32> to vector<8x8xf32>
    %72 = arith.subf %68, %71 : vector<8x8xf32>
    %73 = math.exp %72 : vector<8x8xf32>
    %cst_32 = arith.constant dense<0.000000e+00> : vector<8xf32>
    %74 = vector.multi_reduction <add>, %73, %cst_32 [1] : vector<8x8xf32> to vector<8xf32>
    %75 = vector.shape_cast %74 : vector<8xf32> to vector<8x1xf32>
    %76 = math.log %75 : vector<8x1xf32>
    %77 = arith.addf %70, %76 : vector<8x1xf32>
    %78 = arith.mulf %64, %65 : vector<8x32xf32>
    %cst_33 = arith.constant dense<0.000000e+00> : vector<8xf32>
    %79 = vector.multi_reduction <add>, %78, %cst_33 [1] : vector<8x32xf32> to vector<8xf32>
    %80 = vector.shape_cast %79 : vector<8xf32> to vector<8x1xf32>
    %cst_34 = arith.constant 7.000000e-02 : f32
    %81 = vector.broadcast %cst_34 : f32 to vector<8x1xf32>
    %82 = arith.divf %80, %81 : vector<8x1xf32>
    %83 = arith.subf %77, %82 : vector<8x1xf32>
    %84 = vector.shape_cast %83 : vector<8x1xf32> to vector<1x8x1xf32>
    %cst_35 = arith.constant dense<0.000000e+00> : vector<1xf32>
    %85 = vector.multi_reduction <add>, %84, %cst_35 [1, 2] : vector<1x8x1xf32> to vector<1xf32>
    %86 = vector.shape_cast %85 : vector<1xf32> to vector<1x1x1xf32>
    %87 = vector.extract %86[0, 0, 0] : f32 from vector<1x1x1xf32>
    %cst_36 = arith.constant 8.000000e+00 : f32
    %88 = arith.divf %87, %cst_36 : f32
    %c3 = arith.constant 3 : index
    %89 = memref.load %arg7[%c3] : memref<4xf32, #tpu.memory_space<smem>>
    memref.store %88, %arg7[%c3] : memref<4xf32, #tpu.memory_space<smem>>
    return
  }
}

</mosaic_0001>

<llo_original>
// kernel: tpu_custom_call.1
$region0: #{tpu_custom_call.1}
  #allocation0 [shape = 'u32[]', space=smem, size = 0x4, offset = 0x4, fixed_abs, tag = 'smem constant byte address 0x4 - core index']
  #allocation1 [shape = 'u32[72,128]{1,0:T(1,128)}', space=vmem, size = 0x9000, scoped, tag = 'internal scratch']
  %s0 = inlined_call_operand.vmem [shape: f32[8,64], index: 0, kind: input, shape index: {}]
  %s1 = inlined_call_operand.vmem [shape: f32[64,64], index: 1, kind: input, shape index: {}]
  %s2 = inlined_call_operand.vmem [shape: f32[64,96], index: 2, kind: input, shape index: {}]
  %s3 = inlined_call_operand.vmem [shape: f32[96,64], index: 3, kind: input, shape index: {}]
  %s4 = inlined_call_operand.hbm [shape: f32[64,128], index: 4, kind: input, shape index: {}]
  %s5 = inlined_call_operand.vmem [shape: f32[1,512], index: 5, kind: input, shape index: {}]
  %s6 = inlined_call_operand.hbm [shape: f32[8,256], index: 6, kind: output, shape index: {0}]
  %s7 = inlined_call_operand.hbm [shape: f32[4], index: 7, kind: output, shape index: {1}]
  %8 = xla_tuple %s6, %s7
  %s9 = sld [smem:[#allocation0]]
  $region46: #{tpu_custom_call.1} parent=0
    _
  %s11 = ssub.s32 1, %s9
  %s12 = scalar_select 0, %s11, %s9
  $region1: #{tpu_custom_call.1} parent=0
    #allocation2 [shape = 'u8[32768]{0}', space=vmem, size = 0x8000, scoped, tag = 'input window, operand 4, single buffered']
    #allocation3 [shape = 's32[1]{0}', space=sflag, size = 0x4, scoped, tag = 'scoped memory for tpu_custom_call.1']
    #allocation4 [shape = 's32[1]{0}', space=sflag, size = 0x4, scoped, tag = 'scoped memory for tpu_custom_call.1']
    #allocation5 [shape = 's32[1]{0}', space=sflag, size = 0x4, scoped, tag = 'scoped memory for tpu_custom_call.1']
    #allocation6 [shape = 'u8[8192]{0}', space=vmem, size = 0x2000, scoped, tag = 'output window, operand 0, single buffered']
    #allocation7 [shape = 'u8[512]{0}', space=smem, size = 0x200, scoped, tag = 'output window, operand 1, single buffered']
    %13 = vsyncpa [#allocation3], 0
    %14 = vsyncpa [#allocation4], 0
    %15 = vsyncpa [#allocation5], 0
    // Predicated region
    $region2: #{tpu_custom_call.1} parent=1 // pred_check
      _
    $region3: #{tpu_custom_call.1} parent=1 // pred_check_branch
      %17 = sbr.rel (0) target = $region5
    $region4: #{tpu_custom_call.1} parent=1 // pred_region
      _
    $region5: #{tpu_custom_call.1} parent=1 // pred_fallthru
      _
    // Predicated region
    $region6: #{tpu_custom_call.1} parent=1 // pred_check
      _
    $region7: #{tpu_custom_call.1} parent=1 // pred_check_branch
      %19 = sbr.rel (0) target = $region9
    $region8: #{tpu_custom_call.1} parent=1 // pred_region
      _
    $region9: #{tpu_custom_call.1} parent=1 // pred_fallthru
      _
    // Predicated region
    $region10: #{tpu_custom_call.1} parent=1 // pred_check
      _
    $region11: #{tpu_custom_call.1} parent=1 // pred_check_branch
      %21 = sbr.rel (0) target = $region13
    $region12: #{tpu_custom_call.1} parent=1 // pred_region
      _
    $region13: #{tpu_custom_call.1} parent=1 // pred_fallthru
      _
    // Predicated region
    $region14: #{tpu_custom_call.1} parent=1 // pred_check
      _
    $region15: #{tpu_custom_call.1} parent=1 // pred_check_branch
      %23 = sbr.rel (0) target = $region17
    $region16: #{tpu_custom_call.1} parent=1 // pred_region
      _
    $region17: #{tpu_custom_call.1} parent=1 // pred_fallthru
      _
    // Predicated region
    $region18: #{tpu_custom_call.1} parent=1 // pred_check
      _
    $region19: #{tpu_custom_call.1} parent=1 // pred_check_branch
      %25 = sbr.rel (0) target = $region21
    $region20: #{tpu_custom_call.1} parent=1 // pred_region
      %27 = vsyncadd [#allocation3], 0
      %s28 = sshll.u32 %s4, 4
      %s29 = int_to_ptr.hbm [resolvable:$true] %s28
      %s30 = sshll.u32 [#allocation2], 4
      %s31 = int_to_ptr.vmem [resolvable:$true] %s30
      %36 = dma.hbm_to_vmem [thread:$0]  %s29, 1024, %s31, [#allocation3], 128, 128, 8
    $region21: #{tpu_custom_call.1} parent=1 // pred_fallthru
      _
    // Predicated region
    $region22: #{tpu_custom_call.1} parent=1 // pred_check
      _
    $region23: #{tpu_custom_call.1} parent=1 // pred_check_branch
      %38 = sbr.rel (0) target = $region25
    $region24: #{tpu_custom_call.1} parent=1 // pred_region
      _
    $region25: #{tpu_custom_call.1} parent=1 // pred_fallthru
      _
    // Predicated region
    $region26: #{tpu_custom_call.1} parent=1 // pred_check
      _
    $region27: #{tpu_custom_call.1} parent=1 // pred_check_branch
      %40 = sbr.rel (0) target = $region29
    $region28: #{tpu_custom_call.1} parent=1 // pred_region
      %42 = dma.done [#allocation3], 1024
    $region29: #{tpu_custom_call.1} parent=1 // pred_fallthru
      _
    %v43 = vld [vmem:[%s5] sm:$0x1]
    %v44 = vld [vmem:[%s0] sm:$0xff]
    %v45 = vld [vmem:[%s1] sm:$0xff]
    %v46 = vld [vmem:[%s1 + $0x8] sm:$0xff]
    %v47 = vld [vmem:[%s1 + $0x10] sm:$0xff]
    %v48 = vld [vmem:[%s1 + $0x18] sm:$0xff]
    %v49 = vld [vmem:[%s1 + $0x20] sm:$0xff]
    %v50 = vld [vmem:[%s1 + $0x28] sm:$0xff]
    %v51 = vld [vmem:[%s1 + $0x30] sm:$0xff]
    %v52 = vld [vmem:[%s1 + $0x38] sm:$0xff]
    %v54 = vperm.slane %v43, 0
    %vm56 = vcmask 523264
    %v58 = vsel %vm56, %v44, 0
    %60 = vmatpush.msra.mxu0 0.0
    %61 = vmatpush.msra.mxu0 0.0
    %62 = vmatpush.msra.mxu0 0.0
    %63 = vmatpush.msra.mxu0 0.0
    %64 = vmatpush.msra.mxu0 0.0
    %65 = vmatpush.msra.mxu0 0.0
    %66 = vmatpush.msra.mxu0 0.0
    %67 = vmatpush.msra.mxu0 0.0
    %68 = vmatpush.msra.mxu0 %v52
    %69 = vmatpush.msra.mxu0 %v51
    %70 = vmatpush.msra.mxu0 %v50
    %71 = vmatpush.msra.mxu0 %v49
    %72 = vmatpush.msra.mxu0 %v48
    %73 = vmatpush.msra.mxu0 %v47
    %74 = vmatpush.msra.mxu0 %v46
    %75 = vmatpush.msra.mxu0 %v45
    %76 = vmatmul.f32.gmra.mxu0 %v58
    %v77 = vpop.f32.mrf.mxu0
    %v78 = vadd.f32 %v54, %v77
    %79 = vdwg.mxu0
    %v80 = vld [vmem:[%s2] sm:$0xff]
    %v81 = vld [vmem:[%s2 + $0x8] sm:$0xff]
    %v82 = vld [vmem:[%s2 + $0x10] sm:$0xff]
    %v83 = vld [vmem:[%s2 + $0x18] sm:$0xff]
    %v84 = vld [vmem:[%s2 + $0x20] sm:$0xff]
    %v85 = vld [vmem:[%s2 + $0x28] sm:$0xff]
    %v86 = vld [vmem:[%s2 + $0x30] sm:$0xff]
    %v87 = vld [vmem:[%s2 + $0x38] sm:$0xff]
    %v89 = vsel %vm56, %v78, 0
    %91 = vmatpush.msra.mxu0 0.0
    %92 = vmatpush.msra.mxu0 0.0
    %93 = vmatpush.msra.mxu0 0.0
    %94 = vmatpush.msra.mxu0 0.0
    %95 = vmatpush.msra.mxu0 0.0
    %96 = vmatpush.msra.mxu0 0.0
    %97 = vmatpush.msra.mxu0 0.0
    %98 = vmatpush.msra.mxu0 0.0
    %99 = vmatpush.msra.mxu0 %v87
    %100 = vmatpush.msra.mxu0 %v86
    %101 = vmatpush.msra.mxu0 %v85
    %102 = vmatpush.msra.mxu0 %v84
    %103 = vmatpush.msra.mxu0 %v83
    %104 = vmatpush.msra.mxu0 %v82
    %105 = vmatpush.msra.mxu0 %v81
    %106 = vmatpush.msra.mxu0 %v80
    %107 = vmatmul.f32.gmra.mxu0 %v89
    %v108 = vpop.f32.mrf.mxu0
    %v109 = vadd.f32 0.0, %v108
    %110 = vdwg.mxu0
    %v111 = vlaneseq
    %v112 = vand.u32 %v111, 127
    %vm113 = vcmp.lt.s32.totalorder %v112, 32
    %v114 = vtanh.pop %v109
    %v115 = vmax.f32 %v109, 0.0
    %v116 = vsel %vm113, %v114, %v115
    %v117 = vld [vmem:[%s3] sm:$0xff]
    %v118 = vld [vmem:[%s3 + $0x8] sm:$0xff]
    %v119 = vld [vmem:[%s3 + $0x10] sm:$0xff]
    %v120 = vld [vmem:[%s3 + $0x18] sm:$0xff]
    %v121 = vld [vmem:[%s3 + $0x20] sm:$0xff]
    %v122 = vld [vmem:[%s3 + $0x28] sm:$0xff]
    %v123 = vld [vmem:[%s3 + $0x30] sm:$0xff]
    %v124 = vld [vmem:[%s3 + $0x38] sm:$0xff]
    %v125 = vld [vmem:[%s3 + $0x40] sm:$0xff]
    %v126 = vld [vmem:[%s3 + $0x48] sm:$0xff]
    %v127 = vld [vmem:[%s3 + $0x50] sm:$0xff]
    %v128 = vld [vmem:[%s3 + $0x58] sm:$0xff]
    %vm129 = vcmask 785408
    %v131 = vsel %vm129, %v116, 0
    %133 = vmatpush.msra.mxu0 0.0
    %134 = vmatpush.msra.mxu0 0.0
    %135 = vmatpush.msra.mxu0 0.0
    %136 = vmatpush.msra.mxu0 0.0
    %137 = vmatpush.msra.mxu0 %v128
    %138 = vmatpush.msra.mxu0 %v127
    %139 = vmatpush.msra.mxu0 %v126
    %140 = vmatpush.msra.mxu0 %v125
    %141 = vmatpush.msra.mxu0 %v124
    %142 = vmatpush.msra.mxu0 %v123
    %143 = vmatpush.msra.mxu0 %v122
    %144 = vmatpush.msra.mxu0 %v121
    %145 = vmatpush.msra.mxu0 %v120
    %146 = vmatpush.msra.mxu0 %v119
    %147 = vmatpush.msra.mxu0 %v118
    %148 = vmatpush.msra.mxu0 %v117
    %149 = vmatmul.f32.gmra.mxu0 %v131
    %v150 = vpop.f32.mrf.mxu0
    %v151 = vadd.f32 0.0, %v150
    %152 = vdwg.mxu0
    %153 = vrot.lane.b32.xlu0 %v116, 64
    %v154 = vpop.permute.xlu0 %153
    %157 = vrot.lane.b32.xlu0 %v151, 32
    %v158 = vpop.permute.xlu0 %157
    %v160 = vsel %vm56, %v78, %v154
    %vm161 = vcmask 261120
    %v162 = vsel %vm161, %v154, %v158
    %v163 = vsel %vm129, %v162, 0.0
    %164 = vst [vmem:[#allocation6] sm:$0xff] %v160
    %165 = vst [vmem:[#allocation6 + $0x8] sm:$0xff] %v163
    %v166 = vsel %vm56, %v78, 0.0
    %v167 = vrot.slane %v166, 4
    %v168 = vadd.f32 %v166, %v167
    %v169 = vrot.slane %v168, 2
    %v170 = vadd.f32 %v168, %v169
    %v171 = vrot.slane %v170, 1
    %v172 = vadd.f32 %v170, %v171
    %v173 = vrcp.pop 8.0
    %v174 = vmul.f32 8.0, %v173
    %v175 = vsub.f32 1.0, %v174
    %v176 = vmul.f32 %v173, %v175
    %v177 = vadd.f32 %v173, %v176
    %vm178 = vweird.f32 %v173
    %v179 = vsel %vm178, %v173, %v177
    %v180 = vmul.f32 %v172, %v179
    %v181 = vsel %vm161, %v116, 0.0
    %v182 = vrot.slane %v181, 4
    %v183 = vadd.f32 %v181, %v182
    %v184 = vrot.slane %v183, 2
    %v185 = vadd.f32 %v183, %v184
    %v186 = vrot.slane %v185, 1
    %v187 = vadd.f32 %v185, %v186
    %v188 = vmul.f32 %v187, %v179
    %190 = vrot.lane.b32.xlu0 %v188, 32
    %v191 = vpop.permute.xlu0 %190
    %v193 = vsel %vm161, %v180, %v191
    %v194 = vsel %vm161, %v188, %v180
    %v196 = vrot.slane %v194, 7
    %v199 = vrot.slane %v180, 6
    %vm201 = vcmask 1040384
    %v202 = vsel %vm201, %v193, %v196
    %vm203 = vcmask 1041408
    %v204 = vsel %vm203, %v202, %v199
    %v205 = vld [vmem:[%s5 + $0x1] sm:$0x1]
    %v206 = vld [vmem:[%s5 + $0x2] sm:$0x1]
    %v207 = vld [vmem:[%s5 + $0x3] sm:$0x1]
    %v208 = vld [vmem:[#allocation2] sm:$0xff]
    %v209 = vld [vmem:[#allocation2 + $0x8] sm:$0xff]
    %v210 = vld [vmem:[#allocation2 + $0x10] sm:$0xff]
    %v211 = vld [vmem:[#allocation2 + $0x18] sm:$0xff]
    %v212 = vld [vmem:[#allocation2 + $0x20] sm:$0xff]
    %v213 = vld [vmem:[#allocation2 + $0x28] sm:$0xff]
    %v214 = vld [vmem:[#allocation2 + $0x30] sm:$0xff]
    %v215 = vld [vmem:[#allocation2 + $0x38] sm:$0xff]
    %v217 = vperm.slane %v205, 0
    %v220 = vsel %vm56, %v204, 0
    %222 = vmatpush.msra.mxu0 0.0
    %223 = vmatpush.msra.mxu0 0.0
    %224 = vmatpush.msra.mxu0 0.0
    %225 = vmatpush.msra.mxu0 0.0
    %226 = vmatpush.msra.mxu0 0.0
    %227 = vmatpush.msra.mxu0 0.0
    %228 = vmatpush.msra.mxu0 0.0
    %229 = vmatpush.msra.mxu0 0.0
    %230 = vmatpush.msra.mxu0 %v215
    %231 = vmatpush.msra.mxu0 %v214
    %232 = vmatpush.msra.mxu0 %v213
    %233 = vmatpush.msra.mxu0 %v212
    %234 = vmatpush.msra.mxu0 %v211
    %235 = vmatpush.msra.mxu0 %v210
    %236 = vmatpush.msra.mxu0 %v209
    %237 = vmatpush.msra.mxu0 %v208
    %238 = vmatmul.f32.gmra.mxu0 %v220
    %v239 = vpop.f32.mrf.mxu0
    %v240 = vadd.f32 %v217, %v239
    %241 = vdwg.mxu0
    %v242 = vmax.f32 %v240, 0.0
    %v244 = vperm.slane %v206, 0
    %v246 = vmul.f32 %v242, %v244
    %vm247 = vcmask 1042432
    %v248 = vsel %vm247, %v246, 0.0
    %249 = vadd.xlane.f32.xlu0 %v248
    %v250 = vpop.xlane.xlu0 %249
    %v252 = vperm.slane %v207, 0
    %v254 = vadd.f32 %v250, %v252
    %v255 = vxor.u32 %v254, 2147483648
    %v256 = vmul.f32 %v255, 1.442695
    %v257 = vpow.pop %v256
    %v258 = vadd.f32 %v257, 1.0
    %v259 = vrcp.pop %v258
    %v260 = vmul.f32 %v258, %v259
    %v261 = vsub.f32 1.0, %v260
    %v262 = vmul.f32 %v259, %v261
    %v263 = vadd.f32 %v259, %v262
    %vm264 = vweird.f32 %v258
    %vm265 = vweird.f32 %v259
    %vm266 = vmor %vm264, %vm265
    %v267 = vsel %vm266, %v259, %v263
    %v268 = vand.u32 2147483647, %v258
    %vm269 = vcmp.eq.f32.partialorder %v268, 8.507059e+37
    %v270 = vand.u32 %v258, 2147483648
    %v271 = vor.u32 1.1754944e-38, %v270
    %v272 = vsel %vm269, %v271, %v267
    %v273 = vmul.f32 1.0, %v272
    %s274 = vtos %v273
    %s275 = scalar_lea.smem [#allocation7], 0
    %276 = sst [smem:[%s275]] %s274
    %v277 = vrot.slane %v273, 1
    %s278 = vtos %v277
    %s279 = scalar_lea.smem [#allocation7], 1
    %280 = sst [smem:[%s279]] %s278
    %v281 = vrot.slane %v273, 2
    %s282 = vtos %v281
    %s283 = scalar_lea.smem [#allocation7], 2
    %284 = sst [smem:[%s283]] %s282
    %285 = vrot.lane.b32.xlu0 %v78, 96
    %v286 = vpop.permute.xlu0 %285
    %v287 = vsel %vm161, %v78, 0
    %v289 = vsel %vm161, %v286, 0
    %291 = vmatpush.xpose.msra.mxu0 0.0
    %292 = vmatpush.xpose.msra.mxu0 0.0
    %293 = vmatpush.xpose.msra.mxu0 0.0
    %294 = vmatpush.xpose.msra.mxu0 0.0
    %295 = vmatpush.xpose.msra.mxu0 0.0
    %296 = vmatpush.xpose.msra.mxu0 0.0
    %297 = vmatpush.xpose.msra.mxu0 0.0
    %298 = vmatpush.xpose.msra.mxu0 0.0
    %299 = vmatpush.xpose.msra.mxu0 0.0
    %300 = vmatpush.xpose.msra.mxu0 0.0
    %301 = vmatpush.xpose.msra.mxu0 0.0
    %302 = vmatpush.xpose.msra.mxu0 0.0
    %303 = vmatpush.xpose.msra.mxu0 0.0
    %304 = vmatpush.xpose.msra.mxu0 0.0
    %305 = vmatpush.xpose.msra.mxu0 0.0
    %306 = vmatpush.xpose.msra.mxu0 %v289
    %307 = vmatmul.f32.gmra.mxu0 %v287
    %v308 = vpop.f32.mrf.mxu0
    %v309 = vadd.f32 0.0, %v308
    %310 = vdwg.mxu0
    %v311 = vrcp.pop 0.07
    %v312 = vmul.f32 0.07, %v311
    %v313 = vsub.f32 1.0, %v312
    %v314 = vmul.f32 %v311, %v313
    %v315 = vadd.f32 %v311, %v314
    %vm316 = vweird.f32 %v311
    %v317 = vsel %vm316, %v311, %v315
    %v318 = vmul.f32 %v309, %v317
    %vm319 = vcmask 64512
    %v320 = vsel %vm319, %v318, -inf
    %321 = vmax.xlane.f32.xlu0 %v320
    %v322 = vpop.xlane.xlu0 %321
    %v323 = vsub.f32 %v318, %v322
    %v324 = vmul.f32 %v323, 1.442695
    %v325 = vpow.pop %v324
    %v326 = vsel %vm319, %v325, 0.0
    %327 = vadd.xlane.f32.xlu0 %v326
    %v328 = vpop.xlane.xlu0 %327
    %v329 = vlog2.pop %v328
    %v330 = vmul.f32 %v329, 0.6931472
    %v331 = vadd.f32 %v322, %v330
    %v333 = vmul.f32 %v78, %v286
    %v334 = vsel %vm161, %v333, 0.0
    %335 = vadd.xlane.f32.xlu0 %v334
    %v336 = vpop.xlane.xlu0 %335
    %v337 = vmul.f32 %v336, %v317
    %v338 = vsub.f32 %v331, %v337
    %vm339 = vcmask 7168
    %v340 = vsel %vm339, %v338, 0.0
    %341 = vadd.xlane.f32.xlu0 %v340
    %v342 = vpop.xlane.xlu0 %341
    %v343 = vrot.slane %v342, 4
    %v344 = vadd.f32 %v342, %v343
    %v345 = vrot.slane %v344, 2
    %v346 = vadd.f32 %v344, %v345
    %v347 = vrot.slane %v346, 1
    %v348 = vadd.f32 %v346, %v347
    %s349 = vtos %v348
    %v350 = vrcp.pop 8.0
    %v351 = vmul.f32 8.0, %v350
    %v352 = vsub.f32 1.0, %v351
    %v353 = vmul.f32 %v350, %v352
    %v354 = vadd.f32 %v350, %v353
    %vm355 = vweird.f32 %v350
    %v356 = vsel %vm355, %v350, %v354
    %s357 = vtos %v356
    %s358 = smul.f32 %s349, %s357
    %s359 = scalar_lea.smem [#allocation7], 3
    %360 = sst [smem:[%s359]] %s358
    // Predicated region
    $region30: #{tpu_custom_call.1} parent=1 // pred_check
      _
    $region31: #{tpu_custom_call.1} parent=1 // pred_check_branch
      %362 = sbr.rel (0) target = $region33
    $region32: #{tpu_custom_call.1} parent=1 // pred_region
      %364 = vsyncadd [#allocation4], 0
      %s366 = sshll.u32 [#allocation6], 4
      %s367 = int_to_ptr.vmem [resolvable:$true] %s366
      %s368 = sshll.u32 %s6, 4
      %s369 = int_to_ptr.hbm [resolvable:$true] %s368
      %371 = dma.vmem_to_hbm [thread:$0]  %s367, 256, %s369, [#allocation4]
    $region33: #{tpu_custom_call.1} parent=1 // pred_fallthru
      _
    // Predicated region
    $region34: #{tpu_custom_call.1} parent=1 // pred_check
      _
    $region35: #{tpu_custom_call.1} parent=1 // pred_check_branch
      %373 = sbr.rel (0) target = $region37
    $region36: #{tpu_custom_call.1} parent=1 // pred_region
      %375 = vsyncadd [#allocation5], 0
      %s377 = sshll.u32 %s7, 4
      %s378 = int_to_ptr.hbm [resolvable:$true] %s377
      %380 = dma.smem_to_hbm [#allocation7], 16, %s378, [#allocation5]
    $region37: #{tpu_custom_call.1} parent=1 // pred_fallthru
      _
    // Predicated region
    $region38: #{tpu_custom_call.1} parent=1 // pred_check
      _
    $region39: #{tpu_custom_call.1} parent=1 // pred_check_branch
      %382 = sbr.rel (0) target = $region41
    $region40: #{tpu_custom_call.1} parent=1 // pred_region
      %384 = dma.done [#allocation4], 256
    $region41: #{tpu_custom_call.1} parent=1 // pred_fallthru
      _
    // Predicated region
    $region42: #{tpu_custom_call.1} parent=1 // pred_check
      _
    $region43: #{tpu_custom_call.1} parent=1 // pred_check_branch
      %386 = sbr.rel (0) target = $region45
    $region44: #{tpu_custom_call.1} parent=1 // pred_region
      %388 = dma.done [#allocation5], 16
    $region45: #{tpu_custom_call.1} parent=1 // pred_fallthru
      _
    %389 = sfence
    %390 = vsyncpa [#allocation3], 1
    %391 = vsyncpa [#allocation4], 1
    %392 = vsyncpa [#allocation5], 1

</llo_original>
